<compile_context>
chip_gen: v6e
topology: v6e:2x2x1
jax: 0.10.0
libtpu: 0.0.40
codegen_flags: <defaults>
</compile_context>

<pallas_src>
import functools

import jax
import jax.numpy as jnp
from jax import lax
from jax.experimental import pallas as pl
from jax.experimental.pallas import tpu as pltpu


# --------------------------- VMEM / tiling helpers ---------------------------
def _sublane(dtype) -> int:
    """Sublane packing for `dtype`: second-minor block dims should be multiples
    of this (8 for f32, 16 for bf16, 32 for int8) unless they equal the full
    array dim."""
    return max(8, 32 // jnp.dtype(dtype).itemsize)


def _vmem_plan():
    """Return (total pipelined VMEM byte budget per kernel, vmem_limit_bytes).

    v7x has 64 MiB VMEM per TensorCore (vs 128 MiB on v5e/v6e), so the budget
    is re-derived per generation.  If the query fails we fall back to the
    conservative v7x plan, which is legal everywhere.
    """
    try:
        cap = int(getattr(pltpu.get_tpu_info(), "vmem_capacity_bytes", 64 << 20))
    except Exception:  # pragma: no cover - defensive fallback
        cap = 64 << 20
    if cap <= (64 << 20):            # v7x-class: 64 MiB physical
        return 24 << 20, 32 << 20
    return 48 << 20, 64 << 20        # v5e / v6e: 128 MiB physical (raise v5e's
                                     # 16 MiB default scoped limit explicitly)


# ----------------------------- 'cls' kernel ---------------------------------
def _cls_kernel(x_ref, o_ref):
    # x_ref: (ts, H) slab of the last batch element (batch dim squeezed).
    o_ref[...] = x_ref[...]


def pool_cls(embeds):
    # NOTE: a pure contiguous copy; XLA's `embeds[-1]` slice is equivalent and
    # has zero per-step overhead.  Kept in Pallas (per the exercise) with a
    # byte-budgeted seq tile so double-buffered blocks always fit scoped VMEM.
    B, S, H = embeds.shape
    item = jnp.dtype(embeds.dtype).itemsize
    sub = _sublane(embeds.dtype)
    budget, vmem_limit = _vmem_plan()

    ts = max(1, budget // (4 * H * item))   # 2x input + 2x output double buffers
    if ts >= S:
        ts = S                              # full dim: always a legal block
    else:
        ts = max(sub, (ts // sub) * sub)    # sublane-aligned seq tile

    return pl.pallas_call(
        _cls_kernel,
        out_shape=jax.ShapeDtypeStruct((S, H), embeds.dtype),
        grid_spec=pltpu.PrefetchScalarGridSpec(
            num_scalar_prefetch=0,
            grid=(pl.cdiv(S, ts),),
            in_specs=[pl.BlockSpec((pl.Squeezed(), ts, H),
                                   lambda i: (B - 1, i, 0))],
            out_specs=pl.BlockSpec((ts, H), lambda i: (i, 0)),
        ),
        compiler_params=pltpu.CompilerParams(
            dimension_semantics=("parallel",),
            vmem_limit_bytes=vmem_limit),
        cost_estimate=pl.CostEstimate(
            flops=0, transcendentals=0, bytes_accessed=2 * S * H * item),
    )(embeds)


# --------------------------- 'mean_rep' kernel ------------------------------
def _mean_kernel(x_ref, o_ref, acc_ref, *, inv_s, s_total, ts):
    # x_ref: (tb, ts, H); o_ref: (tb, H); acc_ref: (tb, H) float32 scratch.
    s = pl.program_id(1)

    @pl.when(s == 0)
    def _():
        acc_ref[...] = jnp.zeros_like(acc_ref)

    x = x_ref[...].astype(jnp.float32)   # f32 accumulation: bf16-safe over large S
    if s_total % ts != 0:
        # Tail block of a cdiv grid over-reads past S: mask those seq rows.
        row = lax.broadcasted_iota(jnp.int32, x.shape, 1) + s * ts
        x = jnp.where(row < s_total, x, 0.0)
    acc_ref[...] += jnp.sum(x, axis=1)

    @pl.when(s == pl.num_programs(1) - 1)
    def _():
        o_ref[...] = (acc_ref[...] * inv_s).astype(o_ref.dtype)


def pool_mean_rep(embeds):
    B, S, H = embeds.shape
    item = jnp.dtype(embeds.dtype).itemsize
    sub = _sublane(embeds.dtype)
    budget, vmem_limit = _vmem_plan()

    # Small sublane-dense batch tile; spend the byte budget on long contiguous
    # seq chunks (closer to HBM bandwidth) rather than more batch rows.
    tb = B if B <= sub else sub

    # Bytes:  2*(tb,ts,H) input dbuf + 2*(tb,H) output dbuf + (tb,H) f32 scratch
    fixed = 2 * tb * H * item + tb * H * 4
    per_seq_row = 2 * tb * H * item
    ts = max(1, (budget - fixed) // per_seq_row)
    if ts >= S:
        ts = S
    else:
        ts = max(sub, (ts // sub) * sub)

    out = pl.pallas_call(
        functools.partial(_mean_kernel, inv_s=1.0 / S, s_total=S, ts=ts),
        out_shape=jax.ShapeDtypeStruct((B, H), embeds.dtype),
        grid_spec=pltpu.PrefetchScalarGridSpec(
            num_scalar_prefetch=0,
            grid=(pl.cdiv(B, tb), pl.cdiv(S, ts)),
            in_specs=[pl.BlockSpec((tb, ts, H), lambda b, s: (b, s, 0))],
            out_specs=pl.BlockSpec((tb, H), lambda b, s: (b, 0)),
            scratch_shapes=[pltpu.VMEM((tb, H), jnp.float32)],
        ),
        compiler_params=pltpu.CompilerParams(
            dimension_semantics=("parallel", "arbitrary"),
            vmem_limit_bytes=vmem_limit),
        cost_estimate=pl.CostEstimate(
            flops=B * S * H, transcendentals=0,
            bytes_accessed=(B * S * H + B * H) * item),
    )(embeds)
    return out.reshape(B, 1, H)


# --------------------------- 'rand_day' kernel ------------------------------
def _rand_day_kernel(day_ref, x_hbm, o_ref, sem, *, tb, n_b, n_sem):
    # day_ref: (B,) int32 in SMEM (scalar-prefetched); x_hbm: (B, S, H) raw HBM;
    # o_ref: (tb, H) VMEM output block; sem: ring of n_sem DMA semaphores.
    base = pl.program_id(0) * tb
    rows = jnp.minimum(tb, n_b - base)   # valid rows in this block (tail-safe)

    def _copy(j):
        b = base + j
        return pltpu.make_async_copy(
            x_hbm.at[b, pl.ds(day_ref[b], 1), :],   # one (1, H) row from HBM
            o_ref.at[pl.ds(j, 1), :],               # straight into the out block
            sem.at[j % n_sem])

    # Keep up to n_sem row-gather DMAs in flight: prime, then wait j / start j+n_sem.
    @pl.loop(0, jnp.minimum(rows, n_sem))
    def _(j):
        _copy(j).start()

    @pl.loop(0, rows)
    def _(j):
        _copy(j).wait()

        @pl.when(j + n_sem < rows)
        def _():
            _copy(j + n_sem).start()


def pool_rand_day(embeds, day_indices):
    B, S, H = embeds.shape
    item = jnp.dtype(embeds.dtype).itemsize
    budget, vmem_limit = _vmem_plan()

    # Batch tile: amortize the per-grid-step overhead over many row gathers
    # while keeping the double-buffered (tb, H) output block within budget.
    tb_cap = min(256, max(8, budget // (2 * H * item)))
    tb_cap = max(8, (tb_cap // 8) * 8)
    tb = B if B <= tb_cap else tb_cap
    n_sem = min(8, tb)

    # Divergence from the torch reference (documented): out-of-range indices
    # are clamped to [0, S-1] instead of erroring, so the DMA can never go OOB.
    day_indices = jnp.clip(day_indices.astype(jnp.int32), 0, S - 1)

    out = pl.pallas_call(
        functools.partial(_rand_day_kernel, tb=tb, n_b=B, n_sem=n_sem),
        out_shape=jax.ShapeDtypeStruct((B, H), embeds.dtype),
        grid_spec=pltpu.PrefetchScalarGridSpec(
            num_scalar_prefetch=1,                           # day_indices -> SMEM
            grid=(pl.cdiv(B, tb),),
            in_specs=[pl.BlockSpec(memory_space=pl.ANY)],    # raw HBM, manual DMA
            out_specs=pl.BlockSpec((tb, H), lambda b, day: (b, 0)),
            scratch_shapes=[pltpu.SemaphoreType.DMA((n_sem,))],
        ),
        compiler_params=pltpu.CompilerParams(
            dimension_semantics=("parallel",),
            vmem_limit_bytes=vmem_limit),
        cost_estimate=pl.CostEstimate(
            flops=0, transcendentals=0, bytes_accessed=2 * B * H * item),
    )(day_indices, embeds)
    return out.reshape(B, 1, H)


# ------------------------------ Pooler wrapper ------------------------------
def pooler_forward(pooler, embeds, day_indices=None):
    if pooler == "cls":
        return pool_cls(embeds)
    elif pooler == "mean_rep":
        return pool_mean_rep(embeds)
    elif pooler == "rand_day":
        return pool_rand_day(embeds, day_indices)
    else:
        return embeds  # passthrough, no compute


if __name__ == "__main__":
    key = jax.random.PRNGKey(0)
    k_emb, k_idx = jax.random.split(key)

    B, S, H = 2, 8, 32
    embeds = jax.random.normal(k_emb, (B, S, H), dtype=jnp.float32)
    day_indices = jax.random.randint(k_idx, (B,), 0, S, dtype=jnp.int32)

    # 'cls'
    out_cls = jax.block_until_ready(pooler_forward("cls", embeds))
    assert out_cls.shape == (S, H)
    assert jnp.allclose(out_cls, embeds[-1], atol=1e-6)

    # 'mean_rep'
    out_mean = jax.block_until_ready(pooler_forward("mean_rep", embeds))
    ref_mean = jnp.mean(embeds, axis=1, keepdims=True)
    assert out_mean.shape == (B, 1, H)
    assert jnp.allclose(out_mean, ref_mean, atol=1e-5)

    # 'rand_day'
    out_rd = jax.block_until_ready(pooler_forward("rand_day", embeds, day_indices))
    ref_rd = jnp.stack([embeds[i, day_indices[i]] for i in range(B)])[:, None, :]
    assert out_rd.shape == (B, 1, H)
    assert jnp.allclose(out_rd, ref_rd, atol=1e-6)

    # default passthrough
    out_id = jax.block_until_ready(pooler_forward("none", embeds))
    assert jnp.allclose(out_id, embeds)

    print("KERNEL_OK")
</pallas_src>

<mosaic_0001>
module attributes {stable_mosaic.version = 11 : i64} {
  func.func @_cls_kernel(%arg0: i32, %arg1: memref<1x8x32xf32, #tpu.memory_space<vmem>>, %arg2: memref<8x32xf32, #tpu.memory_space<vmem>>) attributes {dimension_semantics = [#tpu.dimension_semantics<parallel>], iteration_bounds = array<i64: 1>, scalar_prefetch = 0 : i64, scratch_operands = 0 : i64, tpu.core_type = #tpu.core_type<tc>, window_params = [{transform_indices = @transform_0, window_bounds = array<i64: 1, 8, 32>}, {transform_indices = @transform_1, window_bounds = array<i64: 8, 32>}]} {
    %c0 = arith.constant 0 : index
    %c0_0 = arith.constant 0 : index
    %c0_1 = arith.constant 0 : index
    %0 = vector.load %arg1[%c0, %c0_0, %c0_1] : memref<1x8x32xf32, #tpu.memory_space<vmem>>, vector<1x8x32xf32>
    %1 = vector.shape_cast %0 : vector<1x8x32xf32> to vector<8x32xf32>
    %c0_2 = arith.constant 0 : index
    %c0_3 = arith.constant 0 : index
    %2 = vector.load %arg2[%c0_2, %c0_3] : memref<8x32xf32, #tpu.memory_space<vmem>>, vector<8x32xf32>
    tpu.vector_store %arg2[%c0_2, %c0_3], %1 {strides = array<i32>} : memref<8x32xf32, #tpu.memory_space<vmem>>, vector<8x32xf32>,
    return
  }
  func.func @transform_0(%arg0: i32) -> (i32, i32, i32) {
    %c1_i32 = arith.constant 1 : i32
    %c0_i32 = arith.constant 0 : i32
    %c0_i32_0 = arith.constant 0 : i32
    return %c1_i32, %arg0, %c0_i32 : i32, i32, i32
  }
  func.func @transform_1(%arg0: i32) -> (i32, i32) {
    %c0_i32 = arith.constant 0 : i32
    %c0_i32_0 = arith.constant 0 : i32
    return %arg0, %c0_i32 : i32, i32
  }
}

</mosaic_0001>

<llo_original>
// kernel: tpu_custom_call.1
$region0: #{tpu_custom_call.1}
  #allocation0 [shape = 'u32[]', space=smem, size = 0x4, offset = 0x4, fixed_abs, tag = 'smem constant byte address 0x4 - core index']
  #allocation1 [shape = 'u32[144,128]{1,0:T(1,128)}', space=vmem, size = 0x12000, scoped, tag = 'internal scratch']
  %s0 = inlined_call_operand.hbm [shape: f32[2,8,32], index: 0, kind: input, shape index: {}]
  %s1 = inlined_call_operand.hbm [shape: f32[8,32], index: 1, kind: output, shape index: {}]
  %s2 = sld [smem:[#allocation0]]
  $region18: #{tpu_custom_call.1} parent=0
    _
  %s4 = ssub.s32 1, %s2
  %s5 = scalar_select 0, %s4, %s2
  $region1: #{tpu_custom_call.1} parent=0
    #allocation2 [shape = 'u8[4096]{0}', space=vmem, size = 0x1000, scoped, tag = 'input window, operand 0, single buffered']
    #allocation3 [shape = 's32[1]{0}', space=sflag, size = 0x4, scoped, tag = 'scoped memory for tpu_custom_call.1']
    #allocation4 [shape = 's32[1]{0}', space=sflag, size = 0x4, scoped, tag = 'scoped memory for tpu_custom_call.1']
    #allocation5 [shape = 'u8[4096]{0}', space=vmem, size = 0x1000, scoped, tag = 'output window, operand 0, single buffered']
    %6 = vsyncpa [#allocation3], 0
    %7 = vsyncpa [#allocation4], 0
    // Predicated region
    $region2: #{tpu_custom_call.1} parent=1 // pred_check
      _
    $region3: #{tpu_custom_call.1} parent=1 // pred_check_branch
      %9 = sbr.rel (0) target = $region5
    $region4: #{tpu_custom_call.1} parent=1 // pred_region
      %s11 = ssub.s32 128, 128
      %12 = vsyncadd [#allocation3], %s11
      %s13 = scalar_lea.hbm %s0, 128
      %s15 = sshll.u32 [#allocation2], 4
      %s16 = int_to_ptr.vmem [resolvable:$true] %s15
      %18 = dma.hbm_to_vmem [thread:$0]  %s13, 128, %s16, [#allocation3]
    $region5: #{tpu_custom_call.1} parent=1 // pred_fallthru
      _
    // Predicated region
    $region6: #{tpu_custom_call.1} parent=1 // pred_check
      _
    $region7: #{tpu_custom_call.1} parent=1 // pred_check_branch
      %20 = sbr.rel (0) target = $region9
    $region8: #{tpu_custom_call.1} parent=1 // pred_region
      %21 = dma.done [#allocation3], 128
    $region9: #{tpu_custom_call.1} parent=1 // pred_fallthru
      _
    %v22 = vld [vmem:[#allocation2] sm:$0xff]
    %vm23 = vcmask 261120
    %24 = vst.msk [vmem:[#allocation5] sm:$0xff] %vm23, %v22
    // Predicated region
    $region10: #{tpu_custom_call.1} parent=1 // pred_check
      _
    $region11: #{tpu_custom_call.1} parent=1 // pred_check_branch
      %26 = sbr.rel (0) target = $region13
    $region12: #{tpu_custom_call.1} parent=1 // pred_region
      %s28 = ssub.s32 128, 128
      %29 = vsyncadd [#allocation4], %s28
      %s31 = sshll.u32 [#allocation5], 4
      %s32 = int_to_ptr.vmem [resolvable:$true] %s31
      %34 = dma.vmem_to_hbm [thread:$0]  %s32, 128, %s1, [#allocation4]
    $region13: #{tpu_custom_call.1} parent=1 // pred_fallthru
      _
    // Predicated region
    $region14: #{tpu_custom_call.1} parent=1 // pred_check
      _
    $region15: #{tpu_custom_call.1} parent=1 // pred_check_branch
      %36 = sbr.rel (0) target = $region17
    $region16: #{tpu_custom_call.1} parent=1 // pred_region
      %37 = dma.done [#allocation4], 128
    $region17: #{tpu_custom_call.1} parent=1 // pred_fallthru
      _
    %38 = vsyncpa [#allocation3], 1
    %39 = vsyncpa [#allocation4], 1

</llo_original>
